<compile_context>
chip_gen: v5e
topology: v5e:2x2
jax: 0.10.0
libtpu: 0.0.40
codegen_flags: <defaults>
</compile_context>

<pallas_src>
import functools

import jax
import jax.numpy as jnp
from jax.experimental import pallas as pl
from jax.experimental.pallas import tpu as pltpu

MARGIN = 2.0
EPS = 1e-6  # F.pairwise_distance default eps

# Bound on tile rows: (tile_b, 1) f32 intermediates/accumulator are lane-padded
# to 128 lanes (tile_b * 512 B each), so don't let small-D inputs explode rows.
_MAX_TILE_ROWS = 4096
# Keep the label fully resident in VMEM only up to this size; beyond it, fall
# back to per-tile label blocks.
_LABEL_RESIDENT_BYTES = 2 * 1024 * 1024


def _vmem_budget():
    """Returns (input_tile_budget_bytes, vmem_limit_bytes), generation-aware."""
    phys = 64 * 1024 * 1024  # conservative default = v7x per-TensorCore VMEM
    try:
        info = pltpu.get_tpu_info()
        phys = int(getattr(info, "vmem_capacity_bytes", phys)) or phys
    except Exception:
        pass
    # 2 inputs x 2 pipeline buffers must fit `input_budget`; leave headroom for
    # the resident label block, the accumulator and compiler scratch.
    #   v5e/v6e (128 MiB physical) -> 48 MiB tiles, 64 MiB scoped limit.
    #   v7x     ( 64 MiB physical) -> ~38 MiB tiles, ~54 MiB scoped limit.
    input_budget = min(48 << 20, (phys * 6) // 10)
    vmem_limit = min(phys - (8 << 20), input_budget + (16 << 20))
    return int(input_budget), int(vmem_limit)


def _pick_tile_b(batch, feat, itemsize, input_budget):
    # 2 inputs * 2 pipeline buffers * tile_b * feat * itemsize <= input_budget.
    cap = input_budget // (4 * max(feat, 1) * itemsize)
    cap = min(cap, _MAX_TILE_ROWS)
    if cap >= batch:
        return batch                         # single full-extent block
    if cap >= 32:
        cap = (cap // 32) * 32               # sublane-packing-friendly granule
    else:
        cap = max(8, (cap // 8) * 8)
    return min(cap, batch)


def _contrastive_loss_kernel(o1_ref, o2_ref, lbl_ref, out_ref, acc_ref, *,
                             margin, batch_size, tile_b, label_resident,
                             need_mask):
    c = pl.program_id(0)                     # TensorCore / partial-sum index
    i = pl.program_id(1)                     # tile index within this core
    tile_idx = c * pl.num_programs(1) + i    # logical (unclamped) tile index

    @pl.when(i == 0)
    def _():
        acc_ref[...] = jnp.zeros_like(acc_ref)

    o1 = o1_ref[...].astype(jnp.float32)     # (tile_b, D)
    o2 = o2_ref[...].astype(jnp.float32)     # (tile_b, D)

    row_start = tile_idx * tile_b
    if tile_b % 8 == 0:
        row_start = pl.multiple_of(row_start, 8)

    if label_resident:
        # Label lives in VMEM once (padded to the full grid extent); slice it.
        lbl = lbl_ref[pl.ds(row_start, tile_b), :].astype(jnp.float32)
    else:
        lbl = lbl_ref[...].astype(jnp.float32)          # (tile_b, 1)

    diff = o1 - o2 + EPS                                # pairwise_distance eps
    d2 = jnp.sum(diff * diff, axis=-1, keepdims=True)   # (tile_b, 1)
    d = jnp.sqrt(d2)

    # Positive branch uses d^2 directly (== square(sqrt(d^2)) up to ulp).
    per_row = (1.0 - lbl) * d2 + lbl * jnp.square(jnp.maximum(margin - d, 0.0))

    if need_mask:
        # Mask ragged-final-tile rows and fully-padded duplicate tiles.
        row_ids = row_start + jax.lax.broadcasted_iota(
            jnp.int32, (tile_b, 1), 0)
        per_row = jnp.where(row_ids < batch_size, per_row, 0.0)

    acc_ref[...] = acc_ref[...] + per_row               # (tile_b, 1) partials

    @pl.when(i == pl.num_programs(1) - 1)
    def _():
        out_ref[...] = jnp.sum(acc_ref[...], keepdims=True)   # per-core SUM


def contrastive_loss(output1, output2, label, *, margin=MARGIN, tile_b=None):
    B, D = output1.shape
    in_itemsize = jnp.dtype(output1.dtype).itemsize
    input_budget, vmem_limit = _vmem_budget()

    if tile_b is None:
        tile_b = _pick_tile_b(B, D, in_itemsize, input_budget)
    tile_b = min(tile_b, B)
    num_tiles = pl.cdiv(B, tile_b)

    # Leading "parallel" axis: one partial sum per TensorCore (2 on v7x).
    num_cores = 2 if num_tiles >= 2 else 1
    tiles_per_core = pl.cdiv(num_tiles, num_cores)
    padded_tiles = num_cores * tiles_per_core
    padded_B = padded_tiles * tile_b

    need_mask = (B % tile_b != 0) or (padded_tiles != num_tiles)

    label2d = jnp.asarray(label).reshape(B, 1)
    lbl_itemsize = jnp.dtype(label2d.dtype).itemsize
    label_resident = padded_B * lbl_itemsize <= _LABEL_RESIDENT_BYTES
    if label_resident and padded_B != B:
        label2d = jnp.pad(label2d, ((0, padded_B - B), (0, 0)))

    def in_map(c, i):
        # Clamp so padded duplicate tiles (fully masked in-kernel) stay within
        # the array; ragged last tiles are handled by Pallas + the mask.
        return (jnp.minimum(c * tiles_per_core + i, num_tiles - 1), 0)

    if label_resident:
        # Constant block index => fetched once, resident across the grid.
        lbl_spec = pl.BlockSpec((padded_B, 1), lambda c, i: (0, 0))
    else:
        lbl_spec = pl.BlockSpec((tile_b, 1), in_map)

    kernel = functools.partial(
        _contrastive_loss_kernel,
        margin=float(margin), batch_size=B, tile_b=tile_b,
        label_resident=label_resident, need_mask=need_mask)

    partials = pl.pallas_call(
        kernel,
        out_shape=jax.ShapeDtypeStruct((num_cores, 1), jnp.float32),
        grid_spec=pltpu.PrefetchScalarGridSpec(
            num_scalar_prefetch=0,
            grid=(num_cores, tiles_per_core),
            in_specs=[
                pl.BlockSpec((tile_b, D), in_map),
                pl.BlockSpec((tile_b, D), in_map),
                lbl_spec,
            ],
            out_specs=pl.BlockSpec((1, 1), lambda c, i: (c, 0)),
            scratch_shapes=[pltpu.VMEM((tile_b, 1), jnp.float32)],
        ),
        compiler_params=pltpu.CompilerParams(
            dimension_semantics=("parallel", "arbitrary"),
            vmem_limit_bytes=vmem_limit,
        ),
        cost_estimate=pl.CostEstimate(
            flops=3 * B * D + 10 * B,
            transcendentals=B,
            bytes_accessed=(2 * B * D * in_itemsize + B * lbl_itemsize
                            + 4 * num_cores),
        ),
    )(output1, output2, label2d)

    return jnp.sum(partials) / B


def _reference(output1, output2, label, margin=MARGIN):
    # Pure-JAX reference mirroring the PyTorch forward.
    d = jnp.sqrt(jnp.sum(jnp.square(output1 - output2 + EPS), axis=-1))
    lbl = label.astype(jnp.float32)
    return jnp.mean(
        (1.0 - lbl) * jnp.square(d)
        + lbl * jnp.square(jnp.maximum(margin - d, 0.0))
    )


if __name__ == "__main__":
    key = jax.random.PRNGKey(0)
    k1, k2, k3 = jax.random.split(key, 3)

    # Small shapes consistent with the module: batch=8, hidden=32.
    B, D = 8, 32
    output1 = jax.random.normal(k1, (B, D), dtype=jnp.float32)
    output2 = jax.random.normal(k2, (B, D), dtype=jnp.float32)
    label = jax.random.bernoulli(k3, 0.5, (B,)).astype(jnp.float32)

    loss = contrastive_loss(output1, output2, label)
    jax.block_until_ready(loss)
    ref = _reference(output1, output2, label)
    assert jnp.allclose(loss, ref, rtol=1e-5, atol=1e-5), (loss, ref)

    # Exercise the multi-tile + 2-partial-sum + ragged-final-tile path
    # (B not a multiple of tile_b).
    B2 = 12
    k4, k5, k6 = jax.random.split(jax.random.PRNGKey(1), 3)
    o1b = jax.random.normal(k4, (B2, D), dtype=jnp.float32)
    o2b = jax.random.normal(k5, (B2, D), dtype=jnp.float32)
    lblb = jax.random.bernoulli(k6, 0.5, (B2,)).astype(jnp.float32)

    loss2 = contrastive_loss(o1b, o2b, lblb, tile_b=8)
    jax.block_until_ready(loss2)
    ref2 = _reference(o1b, o2b, lblb)
    assert jnp.allclose(loss2, ref2, rtol=1e-5, atol=1e-5), (loss2, ref2)

    print("KERNEL_OK")
</pallas_src>

<mosaic_0001>
module attributes {stable_mosaic.version = 11 : i64} {
  func.func @_contrastive_loss_kernel(%arg0: i32, %arg1: i32, %arg2: memref<8x32xf32, #tpu.memory_space<vmem>>, %arg3: memref<8x32xf32, #tpu.memory_space<vmem>>, %arg4: memref<8x1xf32, #tpu.memory_space<vmem>>, %arg5: memref<1x1xf32, #tpu.memory_space<vmem>>, %arg6: memref<8x1xf32, #tpu.memory_space<vmem>>) attributes {dimension_semantics = [#tpu.dimension_semantics<parallel>, #tpu.dimension_semantics<arbitrary>], iteration_bounds = array<i64: 1, 1>, scalar_prefetch = 0 : i64, scratch_operands = 1 : i64, tpu.core_type = #tpu.core_type<tc>, window_params = [{transform_indices = @transform_0, window_bounds = array<i64: 8, 32>}, {transform_indices = @transform_1, window_bounds = array<i64: 8, 32>}, {pipeline_mode = #tpu.pipeline_mode<synchronous>, transform_indices = @transform_2, window_bounds = array<i64: 8, 1>}, {transform_indices = @transform_3, window_bounds = array<i64: 1, 1>}]} {
    %c1_i32 = arith.constant 1 : i32
    %0 = arith.muli %arg0, %c1_i32 : i32
    %1 = arith.addi %0, %arg1 : i32
    %c0_i32 = arith.constant 0 : i32
    %2 = arith.cmpi eq, %arg1, %c0_i32 : i32
    %3 = arith.extui %2 : i1 to i32
    %c0_i32_0 = arith.constant 0 : i32
    %4 = arith.cmpi ne, %3, %c0_i32_0 : i32
    scf.if %4 {
      %cst_15 = arith.constant 0.000000e+00 : f32
      %34 = vector.broadcast %cst_15 : f32 to vector<8x1xf32>
      %c0_16 = arith.constant 0 : index
      %c0_17 = arith.constant 0 : index
      %35 = vector.load %arg6[%c0_16, %c0_17] : memref<8x1xf32, #tpu.memory_space<vmem>>, vector<8x1xf32>
      tpu.vector_store %arg6[%c0_16, %c0_17], %34 {strides = array<i32>} : memref<8x1xf32, #tpu.memory_space<vmem>>, vector<8x1xf32>,
    } else {
    }
    %c0 = arith.constant 0 : index
    %c0_1 = arith.constant 0 : index
    %5 = vector.load %arg2[%c0, %c0_1] : memref<8x32xf32, #tpu.memory_space<vmem>>, vector<8x32xf32>
    %c0_2 = arith.constant 0 : index
    %c0_3 = arith.constant 0 : index
    %6 = vector.load %arg3[%c0_2, %c0_3] : memref<8x32xf32, #tpu.memory_space<vmem>>, vector<8x32xf32>
    %c8_i32 = arith.constant 8 : i32
    %7 = arith.muli %1, %c8_i32 : i32
    %8 = tpu.assume_multiple %7, 8 : i32
    %9 = arith.index_cast %8 : i32 to index
    %c0_4 = arith.constant 0 : index
    %10 = vector.load %arg4[%9, %c0_4] : memref<8x1xf32, #tpu.memory_space<vmem>>, vector<8x1xf32>
    %11 = arith.subf %5, %6 : vector<8x32xf32>
    %cst = arith.constant 9.99999997E-7 : f32
    %12 = vector.broadcast %cst : f32 to vector<8x32xf32>
    %13 = arith.addf %11, %12 : vector<8x32xf32>
    %14 = arith.mulf %13, %13 : vector<8x32xf32>
    %cst_5 = arith.constant dense<0.000000e+00> : vector<8xf32>
    %15 = vector.multi_reduction <add>, %14, %cst_5 [1] : vector<8x32xf32> to vector<8xf32>
    %16 = vector.shape_cast %15 : vector<8xf32> to vector<8x1xf32>
    %17 = math.sqrt %16 : vector<8x1xf32>
    %cst_6 = arith.constant 1.000000e+00 : f32
    %18 = vector.broadcast %cst_6 : f32 to vector<8x1xf32>
    %19 = arith.subf %18, %10 : vector<8x1xf32>
    %20 = arith.mulf %19, %16 : vector<8x1xf32>
    %cst_7 = arith.constant 2.000000e+00 : f32
    %21 = vector.broadcast %cst_7 : f32 to vector<8x1xf32>
    %22 = arith.subf %21, %17 : vector<8x1xf32>
    %cst_8 = arith.constant 0.000000e+00 : f32
    %23 = vector.broadcast %cst_8 : f32 to vector<8x1xf32>
    %24 = arith.maximumf %22, %23 : vector<8x1xf32>
    %25 = arith.mulf %24, %24 : vector<8x1xf32>
    %26 = arith.mulf %10, %25 : vector<8x1xf32>
    %27 = arith.addf %20, %26 : vector<8x1xf32>
    %c0_9 = arith.constant 0 : index
    %c0_10 = arith.constant 0 : index
    %28 = vector.load %arg6[%c0_9, %c0_10] : memref<8x1xf32, #tpu.memory_space<vmem>>, vector<8x1xf32>
    %29 = arith.addf %28, %27 : vector<8x1xf32>
    %c0_11 = arith.constant 0 : index
    %c0_12 = arith.constant 0 : index
    %30 = vector.load %arg6[%c0_11, %c0_12] : memref<8x1xf32, #tpu.memory_space<vmem>>, vector<8x1xf32>
    tpu.vector_store %arg6[%c0_11, %c0_12], %29 {strides = array<i32>} : memref<8x1xf32, #tpu.memory_space<vmem>>, vector<8x1xf32>,
    %c0_i32_13 = arith.constant 0 : i32
    %31 = arith.cmpi eq, %arg1, %c0_i32_13 : i32
    %32 = arith.extui %31 : i1 to i32
    %c0_i32_14 = arith.constant 0 : i32
    %33 = arith.cmpi ne, %32, %c0_i32_14 : i32
    scf.if %33 {
      %c0_15 = arith.constant 0 : index
      %c0_16 = arith.constant 0 : index
      %34 = vector.load %arg6[%c0_15, %c0_16] : memref<8x1xf32, #tpu.memory_space<vmem>>, vector<8x1xf32>
      %35 = vector.shape_cast %34 : vector<8x1xf32> to vector<1x8x1xf32>
      %cst_17 = arith.constant dense<0.000000e+00> : vector<1xf32>
      %36 = vector.multi_reduction <add>, %35, %cst_17 [1, 2] : vector<1x8x1xf32> to vector<1xf32>
      %37 = vector.shape_cast %36 : vector<1xf32> to vector<1x1x1xf32>
      %38 = vector.extract %37[0, 0, 0] : f32 from vector<1x1x1xf32>
      %39 = vector.broadcast %38 : f32 to vector<1x1xf32>
      %c0_18 = arith.constant 0 : index
      %c0_19 = arith.constant 0 : index
      %40 = vector.load %arg5[%c0_18, %c0_19] : memref<1x1xf32, #tpu.memory_space<vmem>>, vector<1x1xf32>
      tpu.vector_store %arg5[%c0_18, %c0_19], %39 {strides = array<i32>} : memref<1x1xf32, #tpu.memory_space<vmem>>, vector<1x1xf32>,
    } else {
    }
    return
  }
  func.func @transform_0(%arg0: i32, %arg1: i32) -> (i32, i32) {
    %c1_i32 = arith.constant 1 : i32
    %0 = arith.muli %arg0, %c1_i32 : i32
    %1 = arith.addi %0, %arg1 : i32
    %c0_i32 = arith.constant 0 : i32
    %2 = arith.minsi %1, %c0_i32 : i32
    %c0_i32_0 = arith.constant 0 : i32
    %c0_i32_1 = arith.constant 0 : i32
    return %2, %c0_i32_0 : i32, i32
  }
  func.func @transform_1(%arg0: i32, %arg1: i32) -> (i32, i32) {
    %c1_i32 = arith.constant 1 : i32
    %0 = arith.muli %arg0, %c1_i32 : i32
    %1 = arith.addi %0, %arg1 : i32
    %c0_i32 = arith.constant 0 : i32
    %2 = arith.minsi %1, %c0_i32 : i32
    %c0_i32_0 = arith.constant 0 : i32
    %c0_i32_1 = arith.constant 0 : i32
    return %2, %c0_i32_0 : i32, i32
  }
  func.func @transform_2(%arg0: i32, %arg1: i32) -> (i32, i32) {
    %c0_i32 = arith.constant 0 : i32
    %c0_i32_0 = arith.constant 0 : i32
    %c0_i32_1 = arith.constant 0 : i32
    return %c0_i32, %c0_i32_0 : i32, i32
  }
  func.func @transform_3(%arg0: i32, %arg1: i32) -> (i32, i32) {
    %c0_i32 = arith.constant 0 : i32
    %c0_i32_0 = arith.constant 0 : i32
    return %arg0, %c0_i32 : i32, i32
  }
}

</mosaic_0001>

<llo_original>
// kernel: tpu_custom_call.1
$region0: #{tpu_custom_call.1}
  #allocation0 [shape = 'u32[]', space=smem, size = 0x4, offset = 0x4, fixed_abs, tag = 'smem constant byte address 0x4 - core index']
  #allocation1 [shape = 'u32[72,128]{1,0:T(1,128)}', space=vmem, size = 0x9000, scoped, tag = 'internal scratch']
  #allocation2 [shape = 'f32[8,1]{1,0:T(8,128)}', space=vmem, size = 0x1000, scoped, tag = 'scratch operand']
  %s0 = inlined_call_operand.vmem [shape: f32[8,32], index: 0, kind: input, shape index: {}]
  %s1 = inlined_call_operand.hbm [shape: f32[8,32], index: 1, kind: input, shape index: {}]
  %s2 = inlined_call_operand.vmem [shape: f32[8,1], index: 2, kind: input, shape index: {}]
  %s3 = inlined_call_operand.hbm [shape: f32[1,1], index: 3, kind: output, shape index: {}]
  %s4 = sld [smem:[#allocation0]]
  $region34: #{tpu_custom_call.1} parent=0
    _
  %s6 = ssub.s32 1, %s4
  %s7 = scalar_select 0, %s6, %s4
  $region1: #{tpu_custom_call.1} parent=0
    #allocation3 [shape = 'u8[4096]{0}', space=vmem, size = 0x1000, scoped, tag = 'input window, operand 1, single buffered']
    #allocation4 [shape = 's32[1]{0}', space=sflag, size = 0x4, scoped, tag = 'scoped memory for tpu_custom_call.1']
    #allocation5 [shape = 's32[1]{0}', space=sflag, size = 0x4, scoped, tag = 'scoped memory for tpu_custom_call.1']
    #allocation6 [shape = 'u8[512]{0}', space=vmem, size = 0x400, scoped, tag = 'output window, operand 0, single buffered']
    %8 = vsyncpa [#allocation4], 0
    %9 = vsyncpa [#allocation5], 0
    // Predicated region
    $region2: #{tpu_custom_call.1} parent=1 // pred_check
      _
    $region3: #{tpu_custom_call.1} parent=1 // pred_check_branch
      %11 = sbr.rel (0) target = $region5
    $region4: #{tpu_custom_call.1} parent=1 // pred_region
      %s12 = sadd.s32 0, 0
      %p13 = scmp.lt.s32.totalorder %s12, 0
      %s14 = scalar_select %p13, %s12, 0
      %p15 = scmp.lt.s32.totalorder %s14, 0
      %s16 = scalar_select %p15, %s14, 0
      %s17 = smul.addr %s16, 8
      %s18 = scalar_lea.vmem %s0, %s17
      %s19 = sadd.s32 0, 0
      %p20 = scmp.lt.s32.totalorder %s19, 0
      %s21 = scalar_select %p20, %s19, 0
    $region5: #{tpu_custom_call.1} parent=1 // pred_fallthru
      _
    // Predicated region
    $region6: #{tpu_custom_call.1} parent=1 // pred_check
      _
    $region7: #{tpu_custom_call.1} parent=1 // pred_check_branch
      %23 = sbr.rel (0) target = $region9
    $region8: #{tpu_custom_call.1} parent=1 // pred_region
      %s24 = sadd.s32 0, 0
      %p25 = scmp.lt.s32.totalorder %s24, 0
      %s26 = scalar_select %p25, %s24, 0
      %28 = vsyncadd [#allocation4], 0
      %s29 = smul.addr %s26, 8
      %s30 = scalar_lea.hbm %s1, %s29
      %s32 = sshll.u32 %s30, 4
      %s33 = int_to_ptr.hbm [resolvable:$true] %s32
      %s34 = sshll.u32 [#allocation3], 4
      %s35 = int_to_ptr.vmem [resolvable:$true] %s34
      %37 = dma.hbm_to_vmem [thread:$0]  %s33, 128, %s35, [#allocation4]
    $region9: #{tpu_custom_call.1} parent=1 // pred_fallthru
      _
    // Predicated region
    $region10: #{tpu_custom_call.1} parent=1 // pred_check
      _
    $region11: #{tpu_custom_call.1} parent=1 // pred_check_branch
      %39 = sbr.rel (0) target = $region13
    $region12: #{tpu_custom_call.1} parent=1 // pred_region
      _
    $region13: #{tpu_custom_call.1} parent=1 // pred_fallthru
      _
    // Predicated region
    $region14: #{tpu_custom_call.1} parent=1 // pred_check
      _
    $region15: #{tpu_custom_call.1} parent=1 // pred_check_branch
      %41 = sbr.rel (0) target = $region17
    $region16: #{tpu_custom_call.1} parent=1 // pred_region
      %43 = dma.done [#allocation4], 128
    $region17: #{tpu_custom_call.1} parent=1 // pred_fallthru
      _
    %s44 = sadd.s32 0, 0
    %p45 = scmp.lt.s32.totalorder %s44, 0
    %s46 = scalar_select %p45, %s44, 0
    %p47 = scmp.lt.s32.totalorder %s46, 0
    %s48 = scalar_select %p47, %s46, 0
    %s49 = smul.addr %s48, 8
    %s50 = scalar_lea.vmem %s0, %s49
    %s51 = sadd.s32 0, 0
    %p52 = scmp.lt.s32.totalorder %s51, 0
    %s53 = scalar_select %p52, %s51, 0
    %p54 = scmp.lt.s32.totalorder %s53, 0
    %s55 = scalar_select %p54, %s53, 0
    %s56 = smul.addr %s55, 8
    %s57 = scalar_lea.vmem %s0, %s56
    %s58 = sadd.s32 0, 0
    %p59 = scmp.lt.s32.totalorder %s58, 0
    %s60 = scalar_select %p59, %s58, 0
    %s61 = sadd.s32 0, 0
    %p62 = scmp.lt.s32.totalorder %s61, 0
    %s63 = scalar_select %p62, %s61, 0
    %s64 = sadd.s32 0, 0
    %p65 = scmp.eq.s32.totalorder 0, 0
    // Predicated region
    $region18: #{tpu_custom_call.1} parent=1 // pred_check
      %p66 = pneg %p65
    $region19: #{tpu_custom_call.1} parent=1 // pred_check_branch
      %68 = sbr.rel (%p66) target = $region21
    $region20: #{tpu_custom_call.1} parent=1 // pred_region
      %vm69 = vcmask 7168
      %70 = vst.msk [vmem:[#allocation2] sm:$0xff] %vm69, 0.0
    $region21: #{tpu_custom_call.1} parent=1 // pred_fallthru
      _
    %v71 = vld [vmem:[%s57] sm:$0xff]
    %v72 = vld [vmem:[#allocation3] sm:$0xff]
    %s73 = smul.u32 %s64, 8
    %s74 = scalar_lea.vmem %s2, %s73
    %v75 = vld [vmem:[%s74] sm:$0xff]
    %v76 = vsub.f32 %v71, %v72
    %v77 = vadd.f32 %v76, 1e-06
    %v78 = vmul.f32 %v77, %v77
    %vm79 = vcmask 261120
    %v80 = vsel %vm79, %v78, 0.0
    %81 = vadd.xlane.f32.xlu0 %v80
    %v82 = vpop.xlane.xlu0 %81
    %v83 = vrsqrt.pop %v82
    %v84 = vmul.f32 %v83, %v82
    %v85 = vmul.f32 %v84, %v83
    %v86 = vmul.f32 0.5, %v85
    %v87 = vsub.f32 1.5, %v86
    %v88 = vmul.f32 %v83, %v87
    %v89 = vmul.f32 %v82, %v88
    %vm90 = vcmp.eq.f32.partialorder %v82, inf
    %v91 = vsel %vm90, %v82, %v89
    %vm92 = vcmp.eq.f32.partialorder %v82, 0.0
    %v93 = vand.u32 %v82, 2147483648
    %v94 = vsel %vm92, %v93, %v91
    %v95 = vsub.f32 1.0, %v75
    %v96 = vmul.f32 %v95, %v82
    %v97 = vsub.f32 2.0, %v94
    %v98 = vmax.f32 %v97, 0.0
    %v99 = vmul.f32 %v98, %v98
    %v100 = vmul.f32 %v75, %v99
    %v101 = vadd.f32 %v96, %v100
    %v102 = vld [vmem:[#allocation2] sm:$0xff]
    %v103 = vadd.f32 %v102, %v101
    %vm104 = vcmask 7168
    %105 = vst.msk [vmem:[#allocation2] sm:$0xff] %vm104, %v103
    // Predicated region
    $region22: #{tpu_custom_call.1} parent=1 // pred_check
      %p106 = pneg %p65
    $region23: #{tpu_custom_call.1} parent=1 // pred_check_branch
      %108 = sbr.rel (%p106) target = $region25
    $region24: #{tpu_custom_call.1} parent=1 // pred_region
      %v109 = vld [vmem:[#allocation2] sm:$0xff]
      %v110 = vsel %vm104, %v109, 0.0
      %111 = vadd.xlane.f32.xlu0 %v110
      %v112 = vpop.xlane.xlu0 %111
      %v113 = vrot.slane %v112, 4
      %v114 = vadd.f32 %v112, %v113
      %v115 = vrot.slane %v114, 2
      %v116 = vadd.f32 %v114, %v115
      %v117 = vrot.slane %v116, 1
      %v118 = vadd.f32 %v116, %v117
      %s119 = vtos %v118
      %v120 = vstv %s119
      %vm121 = vcmask 0
      %122 = vst.msk [vmem:[#allocation6] sm:$0x1] %vm121, %v120
    $region25: #{tpu_custom_call.1} parent=1 // pred_fallthru
      _
    // Predicated region
    $region26: #{tpu_custom_call.1} parent=1 // pred_check
      _
    $region27: #{tpu_custom_call.1} parent=1 // pred_check_branch
      %124 = sbr.rel (0) target = $region29
    $region28: #{tpu_custom_call.1} parent=1 // pred_region
      %126 = vsyncadd [#allocation5], 0
      %s128 = sshll.u32 [#allocation6], 4
      %s129 = int_to_ptr.vmem [resolvable:$true] %s128
      %s130 = sshll.u32 %s3, 4
      %s131 = int_to_ptr.hbm [resolvable:$true] %s130
      %133 = dma.vmem_to_hbm [thread:$0]  %s129, 16, %s131, [#allocation5]
    $region29: #{tpu_custom_call.1} parent=1 // pred_fallthru
      _
    // Predicated region
    $region30: #{tpu_custom_call.1} parent=1 // pred_check
      _
    $region31: #{tpu_custom_call.1} parent=1 // pred_check_branch
      %135 = sbr.rel (0) target = $region33
    $region32: #{tpu_custom_call.1} parent=1 // pred_region
      %137 = dma.done [#allocation5], 16
    $region33: #{tpu_custom_call.1} parent=1 // pred_fallthru
      _
    %138 = vsyncpa [#allocation4], 1
    %139 = vsyncpa [#allocation5], 1

</llo_original>
